<compile_context>
chip_gen: v7x
topology: tpu7x:2x2x1
jax: 0.10.0
libtpu: 0.0.40
codegen_flags: <defaults>
</compile_context>

<pallas_src>
import math

import jax
import jax.numpy as jnp
from jax.experimental import pallas as pl
from jax.experimental.pallas import tpu as pltpu


def _round_up(x, m):
    return ((x + m - 1) // m) * m


def _pooler_kernel(xp_ref, wconv_ref, bconv_ref, wproj_ref, bproj_ref,
                   o_ref, acc_ref):
    # xp_ref    : (TM, Kc)       bf16   (resident across k: index_map ignores k)
    # wconv_ref : (Kc, TK)       bf16   (streamed column tile of flattened conv W)
    # bconv_ref : (1, TK)        f32
    # wproj_ref : (TK, Hd)       bf16   (streamed row tile of Linear W^T)
    # bproj_ref : (1, Hd)        f32
    # o_ref     : (TM, Hd)       out dtype
    # acc_ref   : (TM, Hd)       f32 VMEM scratch (projection accumulator)
    k = pl.program_id(1)

    @pl.when(k == 0)
    def _():
        acc_ref[...] = jnp.zeros_like(acc_ref)

    # Conv2d(kernel=2, stride=2) column tile == patch matmul + bias (bf16 MXU).
    c = jnp.dot(xp_ref[...], wconv_ref[...], preferred_element_type=jnp.float32)
    c = c + bconv_ref[...]

    # Exact GELU (matches torch.nn.GELU() default, erf-based), in f32.
    g = 0.5 * c * (1.0 + jax.lax.erf(c * (1.0 / math.sqrt(2.0))))

    # Partial projection: accumulate g_k @ Wproj[kT, :] into the f32 accumulator.
    acc_ref[...] += jnp.dot(g.astype(wproj_ref.dtype), wproj_ref[...],
                            preferred_element_type=jnp.float32)

    @pl.when(k == pl.num_programs(1) - 1)
    def _():
        o_ref[...] = (acc_ref[...] + bproj_ref[...]).astype(o_ref.dtype)


def pooler_projector_forward(x, conv_w, conv_b, lin_w, lin_b, hw,
                             *, tm=256, tk=512):
    """x: (B, hw*hw, Cin).  conv_w: (Cout, Cin, 2, 2) [torch layout].
    conv_b: (Cout,).  lin_w: (Cout, Cout) [torch layout].  lin_b: (Cout,)."""
    B, S, Cin = x.shape
    assert S == hw * hw
    Cout = conv_w.shape[0]
    OH = OW = hw // 2
    N = B * OH * OW
    Kc = 4 * Cin

    compute_dtype = jnp.bfloat16

    # --- glue: bf16 downcast fused with 2x2/stride-2 patch extraction ---
    # (cast first so the shuffled HBM copy is half-width)
    # TODO(synk): fully fuse patch extraction into the kernel via strided DMA
    # to remove this extra (half-width) HBM pass entirely.
    xb = x.astype(compute_dtype)
    xp = xb.reshape(B, OH, 2, OW, 2, Cin)               # (b, oh, kh, ow, kw, ci)
    xp = xp.transpose(0, 1, 3, 2, 4, 5)                 # (b, oh, ow, kh, kw, ci)
    xp = xp.reshape(N, Kc)

    # --- glue: flatten/transpose weights to match patch order, cast to bf16 ---
    # torch conv weight (co, ci, kh, kw) -> (kh, kw, ci, co) -> (4*Cin, Cout)
    w_conv_flat = conv_w.transpose(2, 3, 1, 0).reshape(Kc, Cout).astype(compute_dtype)
    b_conv = conv_b.reshape(1, Cout).astype(jnp.float32)
    w_proj = lin_w.T.astype(compute_dtype)              # (Cout, Cout): out = g @ W^T
    b_proj = lin_b.reshape(1, Cout).astype(jnp.float32)

    # --- padding for lane-dense layout and tile divisibility ---
    Kc_pad = _round_up(Kc, 128)
    Hd_pad = _round_up(Cout, 128)
    TM = min(tm, _round_up(N, 16))
    N_pad = _round_up(N, TM)
    if Hd_pad % tk == 0:
        TK = tk
    elif Hd_pad % 256 == 0:
        TK = 256
    else:
        TK = 128
    TK = min(TK, Hd_pad)

    if N_pad != N or Kc_pad != Kc:
        xp = jnp.pad(xp, ((0, N_pad - N), (0, Kc_pad - Kc)))
    if Kc_pad != Kc or Hd_pad != Cout:
        w_conv_flat = jnp.pad(w_conv_flat, ((0, Kc_pad - Kc), (0, Hd_pad - Cout)))
    if Hd_pad != Cout:
        b_conv = jnp.pad(b_conv, ((0, 0), (0, Hd_pad - Cout)))
        w_proj = jnp.pad(w_proj, ((0, Hd_pad - Cout), (0, Hd_pad - Cout)))
        b_proj = jnp.pad(b_proj, ((0, 0), (0, Hd_pad - Cout)))

    grid = (N_pad // TM, Hd_pad // TK)

    out_dtype = x.dtype
    out_itemsize = jnp.dtype(out_dtype).itemsize
    flops = 2 * N_pad * Kc_pad * Hd_pad + 2 * N_pad * Hd_pad * Hd_pad
    transcendentals = N_pad * Hd_pad
    bytes_accessed = (N_pad * Kc_pad * 2 + Kc_pad * Hd_pad * 2
                      + Hd_pad * Hd_pad * 2 + 2 * Hd_pad * 4
                      + N_pad * Hd_pad * out_itemsize)

    out = pl.pallas_call(
        _pooler_kernel,
        out_shape=jax.ShapeDtypeStruct((N_pad, Hd_pad), out_dtype),
        grid_spec=pltpu.PrefetchScalarGridSpec(
            num_scalar_prefetch=0,
            grid=grid,
            in_specs=[
                pl.BlockSpec((TM, Kc_pad), lambda i, k: (i, 0)),   # xp (resident over k)
                pl.BlockSpec((Kc_pad, TK), lambda i, k: (0, k)),   # conv W column tile
                pl.BlockSpec((1, TK),      lambda i, k: (0, k)),   # conv bias tile
                pl.BlockSpec((TK, Hd_pad), lambda i, k: (k, 0)),   # proj W row tile
                pl.BlockSpec((1, Hd_pad),  lambda i, k: (0, 0)),   # proj bias (resident)
            ],
            out_specs=pl.BlockSpec((TM, Hd_pad), lambda i, k: (i, 0)),
            scratch_shapes=[pltpu.VMEM((TM, Hd_pad), jnp.float32)],
        ),
        compiler_params=pltpu.CompilerParams(
            dimension_semantics=("parallel", "arbitrary"),
            vmem_limit_bytes=48 * 1024 * 1024,
        ),
        cost_estimate=pl.CostEstimate(
            flops=int(flops),
            transcendentals=int(transcendentals),
            bytes_accessed=int(bytes_accessed),
        ),
    )(xp, w_conv_flat, b_conv, w_proj, b_proj)

    out = out[:N, :Cout]
    return out.reshape(B, OH * OW, Cout)


def _reference_forward(x, conv_w, conv_b, lin_w, lin_b, hw):
    """Pure-JAX mirror of the PyTorch forward (NCHW conv, f32) for validation."""
    B, S, Cin = x.shape
    x_nchw = x.reshape(B, hw, hw, Cin).transpose(0, 3, 1, 2)       # (B, Cin, H, W)
    y = jax.lax.conv_general_dilated(
        x_nchw, conv_w, window_strides=(2, 2), padding="VALID",
        dimension_numbers=("NCHW", "OIHW", "NCHW"))
    y = y + conv_b.reshape(1, -1, 1, 1)
    B_, Cout, OH, OW = y.shape
    y = y.reshape(B_, Cout, OH * OW).transpose(0, 2, 1)            # (B, OH*OW, Cout)
    g = 0.5 * y * (1.0 + jax.lax.erf(y / jnp.sqrt(2.0)))
    return g @ lin_w.T + lin_b


if __name__ == "__main__":
    # Small, shape-consistent config:
    #   hw = image_size // patch_size = 8, mm_hidden_size = 64, hidden_size = 128
    # (hidden chosen as a multiple of 128 so the output is lane-dense)
    B, hw, mm_hidden, hidden = 2, 8, 64, 128

    key = jax.random.PRNGKey(0)
    kx, kcw, kcb, klw, klb = jax.random.split(key, 5)

    x = jax.random.normal(kx, (B, hw * hw, mm_hidden), dtype=jnp.float32)
    conv_w = 0.05 * jax.random.normal(kcw, (hidden, mm_hidden, 2, 2), jnp.float32)
    conv_b = 0.05 * jax.random.normal(kcb, (hidden,), jnp.float32)
    lin_w = 0.05 * jax.random.normal(klw, (hidden, hidden), jnp.float32)
    lin_b = 0.05 * jax.random.normal(klb, (hidden,), jnp.float32)

    out = pooler_projector_forward(x, conv_w, conv_b, lin_w, lin_b, hw)
    out = jax.block_until_ready(out)

    ref = _reference_forward(x, conv_w, conv_b, lin_w, lin_b, hw)
    assert out.shape == (B, (hw // 2) * (hw // 2), hidden)
    # bf16 matmuls -> looser tolerance than the all-f32 version
    assert jnp.allclose(out, ref, atol=3e-2, rtol=3e-2), \
        float(jnp.max(jnp.abs(out - ref)))

    print("KERNEL_OK")
</pallas_src>

<mosaic_0001>
module attributes {stable_mosaic.version = 11 : i64} {
  func.func @_pooler_kernel(%arg0: i32, %arg1: i32, %arg2: memref<32x256xbf16, #tpu.memory_space<vmem>>, %arg3: memref<256x128xbf16, #tpu.memory_space<vmem>>, %arg4: memref<1x128xf32, #tpu.memory_space<vmem>>, %arg5: memref<128x128xbf16, #tpu.memory_space<vmem>>, %arg6: memref<1x128xf32, #tpu.memory_space<vmem>>, %arg7: memref<32x128xf32, #tpu.memory_space<vmem>>, %arg8: memref<32x128xf32, #tpu.memory_space<vmem>>) attributes {dimension_semantics = [#tpu.dimension_semantics<parallel>, #tpu.dimension_semantics<arbitrary>], iteration_bounds = array<i64: 1, 1>, scalar_prefetch = 0 : i64, scratch_operands = 1 : i64, tpu.core_type = #tpu.core_type<tc>, window_params = [{transform_indices = @transform_0, window_bounds = array<i64: 32, 256>}, {transform_indices = @transform_1, window_bounds = array<i64: 256, 128>}, {transform_indices = @transform_2, window_bounds = array<i64: 1, 128>}, {transform_indices = @transform_3, window_bounds = array<i64: 128, 128>}, {pipeline_mode = #tpu.pipeline_mode<synchronous>, transform_indices = @transform_4, window_bounds = array<i64: 1, 128>}, {transform_indices = @transform_5, window_bounds = array<i64: 32, 128>}]} {
    %c0_i32 = arith.constant 0 : i32
    %0 = arith.cmpi eq, %arg1, %c0_i32 : i32
    %1 = arith.extui %0 : i1 to i32
    %c0_i32_0 = arith.constant 0 : i32
    %2 = arith.cmpi ne, %1, %c0_i32_0 : i32
    scf.if %2 {
      %cst_18 = arith.constant 0.000000e+00 : f32
      %26 = vector.broadcast %cst_18 : f32 to vector<32x128xf32>
      %c0_19 = arith.constant 0 : index
      %c0_20 = arith.constant 0 : index
      %27 = vector.load %arg8[%c0_19, %c0_20] : memref<32x128xf32, #tpu.memory_space<vmem>>, vector<32x128xf32>
      tpu.vector_store %arg8[%c0_19, %c0_20], %26 {strides = array<i32>} : memref<32x128xf32, #tpu.memory_space<vmem>>, vector<32x128xf32>,
    } else {
    }
    %c0 = arith.constant 0 : index
    %c0_1 = arith.constant 0 : index
    %3 = vector.load %arg2[%c0, %c0_1] : memref<32x256xbf16, #tpu.memory_space<vmem>>, vector<32x256xbf16>
    %c0_2 = arith.constant 0 : index
    %c0_3 = arith.constant 0 : index
    %4 = vector.load %arg3[%c0_2, %c0_3] : memref<256x128xbf16, #tpu.memory_space<vmem>>, vector<256x128xbf16>
    %cst = arith.constant dense<0.000000e+00> : vector<32x128xf32>
    %5 = tpu.matmul %3, %4, %cst {dimension_numbers = #tpu.dot_dimension_numbers<[1], [0], [0], [1], [0, 0, 1, 1], [], []>} : vector<32x256xbf16>, vector<256x128xbf16>, vector<32x128xf32> -> vector<32x128xf32>
    %c0_4 = arith.constant 0 : index
    %c0_5 = arith.constant 0 : index
    %6 = vector.load %arg4[%c0_4, %c0_5] : memref<1x128xf32, #tpu.memory_space<vmem>>, vector<1x128xf32>
    %7 = vector.broadcast %6 : vector<1x128xf32> to vector<32x128xf32>
    %8 = arith.addf %5, %7 : vector<32x128xf32>
    %cst_6 = arith.constant 5.000000e-01 : f32
    %9 = vector.broadcast %cst_6 : f32 to vector<32x128xf32>
    %10 = arith.mulf %9, %8 : vector<32x128xf32>
    %cst_7 = arith.constant 0.707106769 : f32
    %11 = vector.broadcast %cst_7 : f32 to vector<32x128xf32>
    %12 = arith.mulf %8, %11 : vector<32x128xf32>
    %13 = math.erf %12 : vector<32x128xf32>
    %cst_8 = arith.constant 1.000000e+00 : f32
    %14 = vector.broadcast %cst_8 : f32 to vector<32x128xf32>
    %15 = arith.addf %14, %13 : vector<32x128xf32>
    %16 = arith.mulf %10, %15 : vector<32x128xf32>
    %c0_9 = arith.constant 0 : index
    %c0_10 = arith.constant 0 : index
    %17 = vector.load %arg8[%c0_9, %c0_10] : memref<32x128xf32, #tpu.memory_space<vmem>>, vector<32x128xf32>
    %18 = arith.truncf %16 : vector<32x128xf32> to vector<32x128xbf16>
    %c0_11 = arith.constant 0 : index
    %c0_12 = arith.constant 0 : index
    %19 = vector.load %arg5[%c0_11, %c0_12] : memref<128x128xbf16, #tpu.memory_space<vmem>>, vector<128x128xbf16>
    %cst_13 = arith.constant dense<0.000000e+00> : vector<32x128xf32>
    %20 = tpu.matmul %18, %19, %cst_13 {dimension_numbers = #tpu.dot_dimension_numbers<[1], [0], [0], [1], [0, 0, 1, 1], [], []>} : vector<32x128xbf16>, vector<128x128xbf16>, vector<32x128xf32> -> vector<32x128xf32>
    %21 = arith.addf %17, %20 : vector<32x128xf32>
    %c0_14 = arith.constant 0 : index
    %c0_15 = arith.constant 0 : index
    %22 = vector.load %arg8[%c0_14, %c0_15] : memref<32x128xf32, #tpu.memory_space<vmem>>, vector<32x128xf32>
    tpu.vector_store %arg8[%c0_14, %c0_15], %21 {strides = array<i32>} : memref<32x128xf32, #tpu.memory_space<vmem>>, vector<32x128xf32>,
    %c0_i32_16 = arith.constant 0 : i32
    %23 = arith.cmpi eq, %arg1, %c0_i32_16 : i32
    %24 = arith.extui %23 : i1 to i32
    %c0_i32_17 = arith.constant 0 : i32
    %25 = arith.cmpi ne, %24, %c0_i32_17 : i32
    scf.if %25 {
      %c0_18 = arith.constant 0 : index
      %c0_19 = arith.constant 0 : index
      %26 = vector.load %arg8[%c0_18, %c0_19] : memref<32x128xf32, #tpu.memory_space<vmem>>, vector<32x128xf32>
      %c0_20 = arith.constant 0 : index
      %c0_21 = arith.constant 0 : index
      %27 = vector.load %arg6[%c0_20, %c0_21] : memref<1x128xf32, #tpu.memory_space<vmem>>, vector<1x128xf32>
      %28 = vector.broadcast %27 : vector<1x128xf32> to vector<32x128xf32>
      %29 = arith.addf %26, %28 : vector<32x128xf32>
      %c0_22 = arith.constant 0 : index
      %c0_23 = arith.constant 0 : index
      %30 = vector.load %arg7[%c0_22, %c0_23] : memref<32x128xf32, #tpu.memory_space<vmem>>, vector<32x128xf32>
      tpu.vector_store %arg7[%c0_22, %c0_23], %29 {strides = array<i32>} : memref<32x128xf32, #tpu.memory_space<vmem>>, vector<32x128xf32>,
    } else {
    }
    return
  }
  func.func @transform_0(%arg0: i32, %arg1: i32) -> (i32, i32) {
    %c0_i32 = arith.constant 0 : i32
    %c0_i32_0 = arith.constant 0 : i32
    return %arg0, %c0_i32 : i32, i32
  }
  func.func @transform_1(%arg0: i32, %arg1: i32) -> (i32, i32) {
    %c0_i32 = arith.constant 0 : i32
    %c0_i32_0 = arith.constant 0 : i32
    return %c0_i32, %arg1 : i32, i32
  }
  func.func @transform_2(%arg0: i32, %arg1: i32) -> (i32, i32) {
    %c0_i32 = arith.constant 0 : i32
    %c0_i32_0 = arith.constant 0 : i32
    return %c0_i32, %arg1 : i32, i32
  }
  func.func @transform_3(%arg0: i32, %arg1: i32) -> (i32, i32) {
    %c0_i32 = arith.constant 0 : i32
    %c0_i32_0 = arith.constant 0 : i32
    return %arg1, %c0_i32 : i32, i32
  }
  func.func @transform_4(%arg0: i32, %arg1: i32) -> (i32, i32) {
    %c0_i32 = arith.constant 0 : i32
    %c0_i32_0 = arith.constant 0 : i32
    %c0_i32_1 = arith.constant 0 : i32
    return %c0_i32, %c0_i32_0 : i32, i32
  }
  func.func @transform_5(%arg0: i32, %arg1: i32) -> (i32, i32) {
    %c0_i32 = arith.constant 0 : i32
    %c0_i32_0 = arith.constant 0 : i32
    return %arg0, %c0_i32 : i32, i32
  }
}

</mosaic_0001>

<llo_original>
// kernel: tpu_custom_call.1
$region0: #{tpu_custom_call.1}
  #allocation0 [shape = 'u32[]', space=smem, size = 0x4, offset = 0x4, fixed_abs, tag = 'smem constant byte address 0x4 - core index']
  #allocation1 [shape = 'u32[144,128]{1,0:T(1,128)}', space=vmem, size = 0x12000, scoped, tag = 'internal scratch']
  #allocation2 [shape = 'f32[32,128]{1,0:T(8,128)}', space=vmem, size = 0x4000, scoped, tag = 'scratch operand']
  %s0 = inlined_call_operand.hbm [shape: bf16[32,256], index: 0, kind: input, shape index: {}]
  %s1 = inlined_call_operand.hbm [shape: bf16[256,128], index: 1, kind: input, shape index: {}]
  %s2 = inlined_call_operand.vmem [shape: f32[1,128], index: 2, kind: input, shape index: {}]
  %s3 = inlined_call_operand.hbm [shape: bf16[128,128], index: 3, kind: input, shape index: {}]
  %s4 = inlined_call_operand.vmem [shape: f32[1,128], index: 4, kind: input, shape index: {}]
  %s5 = inlined_call_operand.hbm [shape: f32[32,128], index: 5, kind: output, shape index: {}]
  %s6 = sld [smem:[#allocation0]]
  $region50: #{tpu_custom_call.1} parent=0
    _
  %s8 = ssub.s32 1, %s6
  %s9 = scalar_select 0, %s8, %s6
  $region1: #{tpu_custom_call.1} parent=0
    #allocation3 [shape = 'u8[16384]{0}', space=vmem, size = 0x4000, scoped, tag = 'input window, operand 0, single buffered']
    #allocation4 [shape = 's32[1]{0}', space=sflag, size = 0x4, scoped, tag = 'scoped memory for tpu_custom_call.1']
    #allocation5 [shape = 's32[1]{0}', space=sflag, size = 0x4, scoped, tag = 'scoped memory for tpu_custom_call.1']
    #allocation6 [shape = 'u8[65536]{0}', space=vmem, size = 0x10000, scoped, tag = 'input window, operand 1, single buffered']
    #allocation7 [shape = 's32[1]{0}', space=sflag, size = 0x4, scoped, tag = 'scoped memory for tpu_custom_call.1']
    #allocation8 [shape = 'u8[32768]{0}', space=vmem, size = 0x8000, scoped, tag = 'input window, operand 3, single buffered']
    #allocation9 [shape = 'u8[16384]{0}', space=vmem, size = 0x4000, scoped, tag = 'output window, operand 0, single buffered']
    %10 = vsyncpa [#allocation4], 0
    %11 = vsyncpa [#allocation7], 0
    %12 = vsyncpa [#allocation5], 0
    // Predicated region
    $region2: #{tpu_custom_call.1} parent=1 // pred_check
      _
    $region3: #{tpu_custom_call.1} parent=1 // pred_check_branch
      %14 = sbr.rel (0) target = $region5
    $region4: #{tpu_custom_call.1} parent=1 // pred_region
      %s16 = ssub.s32 512, 512
      %17 = vsyncadd [#allocation4], %s16
      %s18 = sshll.u32 [#allocation3], 4
      %s19 = int_to_ptr.vmem [resolvable:$true] %s18
      %24 = dma.hbm_to_vmem [thread:$0]  %s0, 512, %s19, [#allocation4], 128, 128, 8
    $region5: #{tpu_custom_call.1} parent=1 // pred_fallthru
      _
    // Predicated region
    $region6: #{tpu_custom_call.1} parent=1 // pred_check
      _
    $region7: #{tpu_custom_call.1} parent=1 // pred_check_branch
      %26 = sbr.rel (0) target = $region9
    $region8: #{tpu_custom_call.1} parent=1 // pred_region
      %s28 = ssub.s32 2048, 2048
      %29 = vsyncadd [#allocation7], %s28
      %s30 = sshll.u32 [#allocation6], 4
      %s31 = int_to_ptr.vmem [resolvable:$true] %s30
      %36 = dma.hbm_to_vmem [thread:$0]  %s1, 2048, %s31, [#allocation7], 64, 64, 4
    $region9: #{tpu_custom_call.1} parent=1 // pred_fallthru
      _
    // Predicated region
    $region10: #{tpu_custom_call.1} parent=1 // pred_check
      _
    $region11: #{tpu_custom_call.1} parent=1 // pred_check_branch
      %38 = sbr.rel (0) target = $region13
    $region12: #{tpu_custom_call.1} parent=1 // pred_region
      _
    $region13: #{tpu_custom_call.1} parent=1 // pred_fallthru
      _
    // Predicated region
    $region14: #{tpu_custom_call.1} parent=1 // pred_check
      _
    $region15: #{tpu_custom_call.1} parent=1 // pred_check_branch
      %40 = sbr.rel (0) target = $region17
    $region16: #{tpu_custom_call.1} parent=1 // pred_region
      %s42 = ssub.s32 1024, 1024
      %43 = vsyncadd [#allocation7], %s42
      %s44 = sshll.u32 [#allocation8], 4
      %s45 = int_to_ptr.vmem [resolvable:$true] %s44
      %50 = dma.hbm_to_vmem [thread:$0]  %s3, 1024, %s45, [#allocation7], 64, 64, 4
    $region17: #{tpu_custom_call.1} parent=1 // pred_fallthru
      _
    // Predicated region
    $region18: #{tpu_custom_call.1} parent=1 // pred_check
      _
    $region19: #{tpu_custom_call.1} parent=1 // pred_check_branch
      %52 = sbr.rel (0) target = $region21
    $region20: #{tpu_custom_call.1} parent=1 // pred_region
      _
    $region21: #{tpu_custom_call.1} parent=1 // pred_fallthru
      _
    // Predicated region
    $region22: #{tpu_custom_call.1} parent=1 // pred_check
      _
    $region23: #{tpu_custom_call.1} parent=1 // pred_check_branch
      %54 = sbr.rel (0) target = $region25
    $region24: #{tpu_custom_call.1} parent=1 // pred_region
      %55 = dma.done [#allocation4], 512
    $region25: #{tpu_custom_call.1} parent=1 // pred_fallthru
      _
    // Predicated region
    $region26: #{tpu_custom_call.1} parent=1 // pred_check
      _
    $region27: #{tpu_custom_call.1} parent=1 // pred_check_branch
      %57 = sbr.rel (0) target = $region29
    $region28: #{tpu_custom_call.1} parent=1 // pred_region
      %58 = dma.done [#allocation7], 2048
    $region29: #{tpu_custom_call.1} parent=1 // pred_fallthru
      _
    // Predicated region
    $region30: #{tpu_custom_call.1} parent=1 // pred_check
      _
    $region31: #{tpu_custom_call.1} parent=1 // pred_check_branch
      %60 = sbr.rel (0) target = $region33
    $region32: #{tpu_custom_call.1} parent=1 // pred_region
      %61 = dma.done [#allocation7], 1024
    $region33: #{tpu_custom_call.1} parent=1 // pred_fallthru
      _
    %p63 = scmp.eq.s32.totalorder 0, 0
    // Predicated region
    $region34: #{tpu_custom_call.1} parent=1 // pred_check
      %p64 = pneg %p63
    $region35: #{tpu_custom_call.1} parent=1 // pred_check_branch
      %66 = sbr.rel (%p64) target = $region37
    $region36: #{tpu_custom_call.1} parent=1 // pred_region
      %67 = vst [vmem:[#allocation2] sm:$0xff] 0.0
      %68 = vst [vmem:[#allocation2 + $0x8] sm:$0xff] 0.0
      %69 = vst [vmem:[#allocation2 + $0x10] sm:$0xff] 0.0
      %70 = vst [vmem:[#allocation2 + $0x18] sm:$0xff] 0.0
    $region37: #{tpu_custom_call.1} parent=1 // pred_fallthru
      _
    %v71 = vld [vmem:[#allocation3] sm:$0xff]
    %v72 = vld [vmem:[#allocation3 + $0x8] sm:$0xff]
    %v73 = vld [vmem:[#allocation3 + $0x10] sm:$0xff]
    %v74 = vld [vmem:[#allocation3 + $0x18] sm:$0xff]
    %v75 = vld [vmem:[#allocation6] sm:$0xf]
    %v76 = vld [vmem:[#allocation6 + $0x4] sm:$0xf]
    %v77 = vld [vmem:[#allocation6 + $0x8] sm:$0xf]
    %v78 = vld [vmem:[#allocation6 + $0xc] sm:$0xf]
    %v79 = vld [vmem:[#allocation6 + $0x10] sm:$0xf]
    %v80 = vld [vmem:[#allocation6 + $0x14] sm:$0xf]
    %v81 = vld [vmem:[#allocation6 + $0x18] sm:$0xf]
    %v82 = vld [vmem:[#allocation6 + $0x1c] sm:$0xf]
    %v83 = vld [vmem:[#allocation6 + $0x20] sm:$0xf]
    %v84 = vld [vmem:[#allocation6 + $0x24] sm:$0xf]
    %v85 = vld [vmem:[#allocation6 + $0x28] sm:$0xf]
    %v86 = vld [vmem:[#allocation6 + $0x2c] sm:$0xf]
    %v87 = vld [vmem:[#allocation6 + $0x30] sm:$0xf]
    %v88 = vld [vmem:[#allocation6 + $0x34] sm:$0xf]
    %v89 = vld [vmem:[#allocation6 + $0x38] sm:$0xf]
    %v90 = vld [vmem:[#allocation6 + $0x3c] sm:$0xf]
    %v91 = vld [vmem:[#allocation6 + $0x40] sm:$0xf]
    %v92 = vld [vmem:[#allocation6 + $0x44] sm:$0xf]
    %v93 = vld [vmem:[#allocation6 + $0x48] sm:$0xf]
    %v94 = vld [vmem:[#allocation6 + $0x4c] sm:$0xf]
    %v95 = vld [vmem:[#allocation6 + $0x50] sm:$0xf]
    %v96 = vld [vmem:[#allocation6 + $0x54] sm:$0xf]
    %v97 = vld [vmem:[#allocation6 + $0x58] sm:$0xf]
    %v98 = vld [vmem:[#allocation6 + $0x5c] sm:$0xf]
    %v99 = vld [vmem:[#allocation6 + $0x60] sm:$0xf]
    %v100 = vld [vmem:[#allocation6 + $0x64] sm:$0xf]
    %v101 = vld [vmem:[#allocation6 + $0x68] sm:$0xf]
    %v102 = vld [vmem:[#allocation6 + $0x6c] sm:$0xf]
    %v103 = vld [vmem:[#allocation6 + $0x70] sm:$0xf]
    %v104 = vld [vmem:[#allocation6 + $0x74] sm:$0xf]
    %v105 = vld [vmem:[#allocation6 + $0x78] sm:$0xf]
    %v106 = vld [vmem:[#allocation6 + $0x7c] sm:$0xf]
    %v107 = vld [vmem:[%s2] sm:$0x1]
    %v109 = vlaneseq
    %v110 = vshrl.u32 %v109, 7
    %v111 = vsub.s32 0, %v110
    %v112 = vrot.slane %v107, %v111
    %v118 = vunpack.c.l.b16 %v71
    %v119 = vunpack.c.h.b16 %v71
    %v120 = vunpack.c.l.b16 %v72
    %v121 = vunpack.c.h.b16 %v72
    %v122 = vunpack.c.l.b16 %v73
    %v123 = vunpack.c.h.b16 %v73
    %v124 = vunpack.c.l.b16 %v74
    %v125 = vunpack.c.h.b16 %v74
    %v126 = vpack.c.b16 %v120, %v118
    %v127 = vpack.c.b16 %v121, %v119
    %v128 = vpack.c.b16 %v124, %v122
    %v129 = vpack.c.b16 %v125, %v123
    %v166 = vunpack.c.l.b16 %v75
    %v167 = vunpack.c.l.b16 %v76
    %v168 = vunpack.c.l.b16 %v77
    %v169 = vunpack.c.l.b16 %v78
    %v170 = vunpack.c.l.b16 %v79
    %v171 = vunpack.c.l.b16 %v80
    %v172 = vunpack.c.l.b16 %v81
    %v173 = vunpack.c.l.b16 %v82
    %v174 = vunpack.c.l.b16 %v83
    %v175 = vunpack.c.l.b16 %v84
    %v176 = vunpack.c.l.b16 %v85
    %v177 = vunpack.c.l.b16 %v86
    %v178 = vunpack.c.l.b16 %v87
    %v179 = vunpack.c.l.b16 %v88
    %v180 = vunpack.c.l.b16 %v89
    %v181 = vunpack.c.l.b16 %v90
    %v182 = vunpack.c.l.b16 %v91
    %v183 = vunpack.c.l.b16 %v92
    %v184 = vunpack.c.l.b16 %v93
    %v185 = vunpack.c.l.b16 %v94
    %v186 = vunpack.c.l.b16 %v95
    %v187 = vunpack.c.l.b16 %v96
    %v188 = vunpack.c.l.b16 %v97
    %v189 = vunpack.c.l.b16 %v98
    %v190 = vunpack.c.l.b16 %v99
    %v191 = vunpack.c.l.b16 %v100
    %v192 = vunpack.c.l.b16 %v101
    %v193 = vunpack.c.l.b16 %v102
    %v194 = vunpack.c.l.b16 %v103
    %v195 = vunpack.c.l.b16 %v104
    %v196 = vunpack.c.l.b16 %v105
    %v197 = vunpack.c.l.b16 %v106
    %v198 = vpack.c.b16 %v167, %v166
    %v199 = vpack.c.b16 %v169, %v168
    %v200 = vpack.c.b16 %v171, %v170
    %v201 = vpack.c.b16 %v173, %v172
    %v202 = vpack.c.b16 %v175, %v174
    %v203 = vpack.c.b16 %v177, %v176
    %v204 = vpack.c.b16 %v179, %v178
    %v205 = vpack.c.b16 %v181, %v180
    %v206 = vpack.c.b16 %v183, %v182
    %v207 = vpack.c.b16 %v185, %v184
    %v208 = vpack.c.b16 %v187, %v186
    %v209 = vpack.c.b16 %v189, %v188
    %v210 = vpack.c.b16 %v191, %v190
    %v211 = vpack.c.b16 %v193, %v192
    %v212 = vpack.c.b16 %v195, %v194
    %v213 = vpack.c.b16 %v197, %v196
    %230 = vmatprep.subr.bf16.mxu0 0
    %231 = vmatpush1.bf16.msra.mxu0 %v198
    %232 = vmatprep.subr.bf16.mxu0 0
    %233 = vmatpush1.bf16.msra.mxu0 %v199
    %234 = vmatprep.subr.bf16.mxu0 0
    %235 = vmatpush1.bf16.msra.mxu0 %v200
    %236 = vmatprep.subr.bf16.mxu0 0
    %237 = vmatpush1.bf16.msra.mxu0 %v201
    %238 = vmatprep.subr.bf16.mxu0 0
    %239 = vmatpush1.bf16.msra.mxu0 %v202
    %240 = vmatprep.subr.bf16.mxu0 0
    %241 = vmatpush1.bf16.msra.mxu0 %v203
    %242 = vmatprep.subr.bf16.mxu0 0
    %243 = vmatpush1.bf16.msra.mxu0 %v204
    %244 = vmatprep.subr.bf16.mxu0 0
    %245 = vmatpush1.bf16.msra.mxu0 %v205
    %246 = vmatprep.subr.bf16.mxu0 0
    %247 = vmatpush1.bf16.msra.mxu0 %v206
    %248 = vmatprep.subr.bf16.mxu0 0
    %249 = vmatpush1.bf16.msra.mxu0 %v207
    %250 = vmatprep.subr.bf16.mxu0 0
    %251 = vmatpush1.bf16.msra.mxu0 %v208
    %252 = vmatprep.subr.bf16.mxu0 0
    %253 = vmatpush1.bf16.msra.mxu0 %v209
    %254 = vmatprep.subr.bf16.mxu0 0
    %255 = vmatpush1.bf16.msra.mxu0 %v210
    %256 = vmatprep.subr.bf16.mxu0 0
    %257 = vmatpush1.bf16.msra.mxu0 %v211
    %258 = vmatprep.subr.bf16.mxu0 0
    %259 = vmatpush1.bf16.msra.mxu0 %v212
    %260 = vmatprep.subr.bf16.mxu0 0
    %261 = vmatpush1.bf16.msra.mxu0 %v213
    %262 = vmatprep.mubr.bf16.mxu0 %v127
    %263 = vmatmul.mubr.bf16.gmra.mrb[0].mxu0 %v126
    %v264 = vpop.f32.mrb[0].mxu0
    %v265 = vadd.f32 %v112, %v264
    %v266 = vpop.f32.mrb[0].mxu0
    %v267 = vpop.f32.mrb[0].mxu0
    %v268 = vadd.f32 %v112, %v267
    %v269 = vpop.f32.mrb[0].mxu0
    %270 = vmatprep.mubr.bf16.mxu0 %v129
    %271 = vmatmul.mubr.bf16.gmra.mrb[0].mxu0 %v128
    %v272 = vpop.f32.mrb[0].mxu0
    %v273 = vadd.f32 %v112, %v272
    %v274 = vpop.f32.mrb[0].mxu0
    %v275 = vpop.f32.mrb[0].mxu0
    %v276 = vadd.f32 %v112, %v275
    %v277 = vpop.f32.mrb[0].mxu0
    %278 = vdwg.mxu0
    %v279 = vmul.f32 %v265, 0.5
    %v280 = vmul.f32 %v268, 0.5
    %v281 = vmul.f32 %v273, 0.5
    %v282 = vmul.f32 %v276, 0.5
    %v283 = vmul.f32 %v265, 0.70710677
    %v284 = vmul.f32 %v268, 0.70710677
    %v285 = vmul.f32 %v273, 0.70710677
    %v286 = vmul.f32 %v276, 0.70710677
    %v287 = verf.f32.pop %v283
    %v288 = verf.f32.pop %v284
    %v289 = verf.f32.pop %v285
    %v290 = verf.f32.pop %v286
    %v291 = vadd.f32 %v287, 1.0
    %v292 = vadd.f32 %v288, 1.0
    %v293 = vadd.f32 %v289, 1.0
    %v294 = vadd.f32 %v290, 1.0
    %v295 = vmul.f32 %v279, %v291
    %v296 = vmul.f32 %v280, %v292
    %v297 = vmul.f32 %v281, %v293
    %v298 = vmul.f32 %v282, %v294
    %v299 = vld [vmem:[#allocation2] sm:$0xff]
    %v300 = vld [vmem:[#allocation2 + $0x8] sm:$0xff]
    %v301 = vld [vmem:[#allocation2 + $0x10] sm:$0xff]
    %v302 = vld [vmem:[#allocation2 + $0x18] sm:$0xff]
    %v303 = vpack.c.bf16 %v296, %v295
    %v304 = vpack.c.bf16 %v298, %v297
    %v305 = vld [vmem:[#allocation8] sm:$0xf]
    %v306 = vld [vmem:[#allocation8 + $0x4] sm:$0xf]
    %v307 = vld [vmem:[#allocation8 + $0x8] sm:$0xf]
    %v308 = vld [vmem:[#allocation8 + $0xc] sm:$0xf]
    %v309 = vld [vmem:[#allocation8 + $0x10] sm:$0xf]
    %v310 = vld [vmem:[#allocation8 + $0x14] sm:$0xf]
    %v311 = vld [vmem:[#allocation8 + $0x18] sm:$0xf]
    %v312 = vld [vmem:[#allocation8 + $0x1c] sm:$0xf]
    %v313 = vld [vmem:[#allocation8 + $0x20] sm:$0xf]
    %v314 = vld [vmem:[#allocation8 + $0x24] sm:$0xf]
    %v315 = vld [vmem:[#allocation8 + $0x28] sm:$0xf]
    %v316 = vld [vmem:[#allocation8 + $0x2c] sm:$0xf]
    %v317 = vld [vmem:[#allocation8 + $0x30] sm:$0xf]
    %v318 = vld [vmem:[#allocation8 + $0x34] sm:$0xf]
    %v319 = vld [vmem:[#allocation8 + $0x38] sm:$0xf]
    %v320 = vld [vmem:[#allocation8 + $0x3c] sm:$0xf]
    %v337 = vunpack.c.l.b16 %v305
    %v338 = vunpack.c.l.b16 %v306
    %v339 = vunpack.c.l.b16 %v307
    %v340 = vunpack.c.l.b16 %v308
    %v341 = vunpack.c.l.b16 %v309
    %v342 = vunpack.c.l.b16 %v310
    %v343 = vunpack.c.l.b16 %v311
    %v344 = vunpack.c.l.b16 %v312
    %v345 = vunpack.c.l.b16 %v313
    %v346 = vunpack.c.l.b16 %v314
    %v347 = vunpack.c.l.b16 %v315
    %v348 = vunpack.c.l.b16 %v316
    %v349 = vunpack.c.l.b16 %v317
    %v350 = vunpack.c.l.b16 %v318
    %v351 = vunpack.c.l.b16 %v319
    %v352 = vunpack.c.l.b16 %v320
    %v353 = vpack.c.b16 %v338, %v337
    %v354 = vpack.c.b16 %v340, %v339
    %v355 = vpack.c.b16 %v342, %v341
    %v356 = vpack.c.b16 %v344, %v343
    %v357 = vpack.c.b16 %v346, %v345
    %v358 = vpack.c.b16 %v348, %v347
    %v359 = vpack.c.b16 %v350, %v349
    %v360 = vpack.c.b16 %v352, %v351
    %369 = vmatprep.subr.bf16.mxu0 0
    %370 = vmatpush1.bf16.msra.mxu0 %v353
    %371 = vmatprep.subr.bf16.mxu0 0
    %372 = vmatpush1.bf16.msra.mxu0 %v354
    %373 = vmatprep.subr.bf16.mxu0 0
    %374 = vmatpush1.bf16.msra.mxu0 %v355
    %375 = vmatprep.subr.bf16.mxu0 0
    %376 = vmatpush1.bf16.msra.mxu0 %v356
    %377 = vmatprep.subr.bf16.mxu0 0
    %378 = vmatpush1.bf16.msra.mxu0 %v357
    %379 = vmatprep.subr.bf16.mxu0 0
    %380 = vmatpush1.bf16.msra.mxu0 %v358
    %381 = vmatprep.subr.bf16.mxu0 0
    %382 = vmatpush1.bf16.msra.mxu0 %v359
    %383 = vmatprep.subr.bf16.mxu0 0
    %384 = vmatpush1.bf16.msra.mxu0 %v360
    %385 = vmatprep.subr.bf16.mxu0 0
    %386 = vmatpush1.bf16.msra.mxu0 0
    %387 = vmatprep.subr.bf16.mxu0 0
    %388 = vmatpush1.bf16.msra.mxu0 0
    %389 = vmatprep.subr.bf16.mxu0 0
    %390 = vmatpush1.bf16.msra.mxu0 0
    %391 = vmatprep.subr.bf16.mxu0 0
    %392 = vmatpush1.bf16.msra.mxu0 0
    %393 = vmatprep.subr.bf16.mxu0 0
    %394 = vmatpush1.bf16.msra.mxu0 0
    %395 = vmatprep.subr.bf16.mxu0 0
    %396 = vmatpush1.bf16.msra.mxu0 0
    %397 = vmatprep.subr.bf16.mxu0 0
    %398 = vmatpush1.bf16.msra.mxu0 0
    %399 = vmatprep.subr.bf16.mxu0 0
    %400 = vmatpush1.bf16.msra.mxu0 0
    %401 = vmatprep.mubr.bf16.mxu0 0
    %402 = vmatmul.mubr.bf16.gmra.mrb[0].mxu0 %v303
    %v403 = vpop.f32.mrb[0].mxu0
    %v404 = vadd.f32 0.0, %v403
    %v405 = vpop.f32.mrb[0].mxu0
    %v406 = vpop.f32.mrb[0].mxu0
    %v407 = vadd.f32 0.0, %v406
    %v408 = vpop.f32.mrb[0].mxu0
    %409 = vmatprep.mubr.bf16.mxu0 0
    %410 = vmatmul.mubr.bf16.gmra.mrb[0].mxu0 %v304
    %v411 = vpop.f32.mrb[0].mxu0
    %v412 = vadd.f32 0.0, %v411
    %v413 = vpop.f32.mrb[0].mxu0
    %v414 = vpop.f32.mrb[0].mxu0
    %v415 = vadd.f32 0.0, %v414
    %v416 = vpop.f32.mrb[0].mxu0
    %417 = vdwg.mxu0
    %v418 = vadd.f32 %v299, %v404
    %v419 = vadd.f32 %v300, %v407
    %v420 = vadd.f32 %v301, %v412
    %v421 = vadd.f32 %v302, %v415
    %422 = vst [vmem:[#allocation2] sm:$0xff] %v418
    %423 = vst [vmem:[#allocation2 + $0x8] sm:$0xff] %v419
    %424 = vst [vmem:[#allocation2 + $0x10] sm:$0xff] %v420
    %425 = vst [vmem:[#allocation2 + $0x18] sm:$0xff] %v421
    // Predicated region
    $region38: #{tpu_custom_call.1} parent=1 // pred_check
      %p426 = pneg %p63
    $region39: #{tpu_custom_call.1} parent=1 // pred_check_branch
      %428 = sbr.rel (%p426) target = $region41
    $region40: #{tpu_custom_call.1} parent=1 // pred_region
      %v429 = vld [vmem:[#allocation2] sm:$0xff]
      %v430 = vld [vmem:[#allocation2 + $0x8] sm:$0xff]
      %v431 = vld [vmem:[#allocation2 + $0x10] sm:$0xff]
      %v432 = vld [vmem:[#allocation2 + $0x18] sm:$0xff]
      %v433 = vld [vmem:[%s4] sm:$0x1]
      %v435 = vlaneseq
      %v436 = vshrl.u32 %v435, 7
      %v437 = vsub.s32 0, %v436
      %v438 = vrot.slane %v433, %v437
      %v440 = vadd.f32 %v429, %v438
      %v441 = vadd.f32 %v430, %v438
      %v442 = vadd.f32 %v431, %v438
      %v443 = vadd.f32 %v432, %v438
      %444 = vst [vmem:[#allocation9] sm:$0xff] %v440
      %445 = vst [vmem:[#allocation9 + $0x8] sm:$0xff] %v441
      %446 = vst [vmem:[#allocation9 + $0x10] sm:$0xff] %v442
      %447 = vst [vmem:[#allocation9 + $0x18] sm:$0xff] %v443
    $region41: #{tpu_custom_call.1} parent=1 // pred_fallthru
      _
    // Predicated region
    $region42: #{tpu_custom_call.1} parent=1 // pred_check
      _
    $region43: #{tpu_custom_call.1} parent=1 // pred_check_branch
      %449 = sbr.rel (0) target = $region45
    $region44: #{tpu_custom_call.1} parent=1 // pred_region
      %s451 = ssub.s32 512, 512
      %452 = vsyncadd [#allocation5], %s451
      %s453 = sshll.u32 [#allocation9], 4
      %s454 = int_to_ptr.vmem [resolvable:$true] %s453
      %459 = dma.vmem_to_hbm [thread:$0]  %s454, 512, %s5, [#allocation5], 128, 128, 8
    $region45: #{tpu_custom_call.1} parent=1 // pred_fallthru
      _
    // Predicated region
    $region46: #{tpu_custom_call.1} parent=1 // pred_check
      _
    $region47: #{tpu_custom_call.1} parent=1 // pred_check_branch
      %461 = sbr.rel (0) target = $region49
    $region48: #{tpu_custom_call.1} parent=1 // pred_region
      %462 = dma.done [#allocation5], 512
    $region49: #{tpu_custom_call.1} parent=1 // pred_fallthru
      _
    %463 = vsyncpa [#allocation4], 1
    %464 = vsyncpa [#allocation7], 1
    %465 = vsyncpa [#allocation5], 1

</llo_original>
